<compile_context>
chip_gen: v7x
topology: tpu7x:2x2x1
jax: 0.10.0
libtpu: 0.0.40
codegen_flags: <defaults>
</compile_context>

<pallas_src>
import functools

import jax
import jax.numpy as jnp
from jax.experimental import pallas as pl
from jax.experimental.pallas import tpu as pltpu

TAU = 1e-6
_TARGET_BLOCK_BYTES = 2 << 20  # ~2 MiB of f32 per input block


def _round_up(v, m):
    return ((v + m - 1) // m) * m


def _onehot_max_kernel(x_ref, o_ref, *, tau):
    # Block: (NB, C, tile) -- channels on sublanes (axis -2), spatial on lanes.
    # Same f32 divide as the XLA reference (tau is a weak Python float -> f32).
    x = x_ref[...].astype(jnp.float32) / tau
    # Numerically-stable softmax over the channel (sublane) axis.
    m = jnp.max(x, axis=-2, keepdims=True)
    e = jnp.exp(x - m)
    s = jnp.sum(e, axis=-2, keepdims=True)          # s >= 1, never zero
    o_ref[...] = (e / s).astype(o_ref.dtype)        # exact normalisation


def differentiable_one_hot_max(x, tau=TAU, out_dtype=None,
                               target_block_bytes=_TARGET_BLOCK_BYTES):
    """x: (N, C, H, W) -> softmax(x / tau, axis=1)."""
    N, C, H, W = x.shape
    HW = H * W
    out_dtype = x.dtype if out_dtype is None else out_dtype
    x2 = x.reshape(N, C, HW)  # lane-dense: spatial on the last (lane) axis

    # VMEM footprint of one (nb, C, tile) f32 block, incl. sublane/lane padding.
    c_pad = _round_up(C, 8)
    per_image_bytes = c_pad * _round_up(HW, 128) * 4

    if per_image_bytes <= target_block_bytes:
        # Small images: one spatial tile; fold several batch images per block
        # so each grid step moves a decent chunk (per-step overhead ~0.35 us).
        tile, n_s = HW, 1
        nb_target = max(1, target_block_bytes // per_image_bytes)
        nb = 1
        for d in range(1, N + 1):          # largest divisor of N <= nb_target
            if N % d == 0 and d <= nb_target:
                nb = d
        n_b = N // nb
    else:
        # Large images: one image per block; tile the spatial axis (x128 lanes).
        nb, n_b = 1, N
        tile = max(128, (target_block_bytes // (c_pad * 4)) // 128 * 128)
        tile = min(tile, _round_up(HW, 128))
        n_s = pl.cdiv(HW, tile)

    # v7x has 2 TensorCores sharing HBM bandwidth: expose >= 2 parallel grid
    # steps for big single-block problems (tiny ones aren't worth the split).
    if n_b * n_s == 1 and HW > 128 and nb * per_image_bytes >= (512 << 10):
        tile = _round_up(pl.cdiv(HW, 2), 128)
        n_s = pl.cdiv(HW, tile)

    # Scoped-VMEM budget: double-buffered in + out blocks (+ headroom).
    block_bytes = nb * c_pad * _round_up(tile, 128) * 4
    vmem_needed = 4 * block_bytes + (2 << 20)
    vmem_limit = int(min(vmem_needed, 48 << 20)) if vmem_needed > (14 << 20) else None

    out = pl.pallas_call(
        functools.partial(_onehot_max_kernel, tau=float(tau)),
        out_shape=jax.ShapeDtypeStruct((N, C, HW), out_dtype),
        grid_spec=pltpu.PrefetchScalarGridSpec(
            num_scalar_prefetch=0,
            grid=(n_b, n_s),
            in_specs=[pl.BlockSpec((nb, C, tile), lambda b, s: (b, 0, s))],
            out_specs=pl.BlockSpec((nb, C, tile), lambda b, s: (b, 0, s)),
        ),
        compiler_params=pltpu.CompilerParams(
            # No cross-step reduction: both grid axes are independent work.
            dimension_semantics=("parallel", "parallel"),
            vmem_limit_bytes=vmem_limit,
        ),
    )(x2)
    return out.reshape(N, C, H, W)


if __name__ == "__main__":
    key = jax.random.PRNGKey(0)
    # Small NCHW input consistent with the module's forward.
    x = jax.random.normal(key, (2, 4, 16, 16), dtype=jnp.float32)

    out = jax.block_until_ready(differentiable_one_hot_max(x))
    assert out.shape == x.shape and out.dtype == x.dtype

    ref = jax.nn.softmax(x / TAU, axis=1)
    # softmax(x / 1e-6) is effectively an argmax one-hot.  It is ill-conditioned
    # only at pixels whose top-two channel gap is O(tau); there any two correct
    # implementations may legitimately disagree.  Compare on the (essentially
    # all) well-conditioned pixels and check normalisation everywhere.
    well_cond = jnp.max(ref, axis=1, keepdims=True) > 0.999
    err = jnp.where(well_cond, jnp.abs(out - ref), 0.0)
    assert float(jnp.max(err)) < 1e-4, "mismatch vs reference softmax"
    assert jnp.allclose(jnp.sum(out, axis=1), 1.0, atol=1e-4), \
        "softmax does not sum to 1 over channels"

    print("KERNEL_OK")
</pallas_src>

<mosaic_0001>
module attributes {stable_mosaic.version = 11 : i64} {
  func.func @_onehot_max_kernel(%arg0: i32, %arg1: i32, %arg2: memref<2x4x256xf32, #tpu.memory_space<vmem>>, %arg3: memref<2x4x256xf32, #tpu.memory_space<vmem>>) attributes {dimension_semantics = [#tpu.dimension_semantics<parallel>, #tpu.dimension_semantics<parallel>], iteration_bounds = array<i64: 1, 1>, scalar_prefetch = 0 : i64, scratch_operands = 0 : i64, tpu.core_type = #tpu.core_type<tc>, window_params = [{transform_indices = @transform_0, window_bounds = array<i64: 2, 4, 256>}, {transform_indices = @transform_1, window_bounds = array<i64: 2, 4, 256>}]} {
    %c0 = arith.constant 0 : index
    %c0_0 = arith.constant 0 : index
    %c0_1 = arith.constant 0 : index
    %0 = vector.load %arg2[%c0, %c0_0, %c0_1] : memref<2x4x256xf32, #tpu.memory_space<vmem>>, vector<2x4x256xf32>
    %cst = arith.constant 9.99999997E-7 : f32
    %1 = vector.broadcast %cst : f32 to vector<2x4x256xf32>
    %2 = arith.divf %0, %1 : vector<2x4x256xf32>
    %cst_2 = arith.constant dense<0xFF800000> : vector<2x256xf32>
    %3 = vector.multi_reduction <maximumf>, %2, %cst_2 [1] : vector<2x4x256xf32> to vector<2x256xf32>
    %4 = vector.shape_cast %3 : vector<2x256xf32> to vector<2x1x256xf32>
    %5 = vector.broadcast %4 : vector<2x1x256xf32> to vector<2x4x256xf32>
    %6 = arith.subf %2, %5 : vector<2x4x256xf32>
    %7 = math.exp %6 : vector<2x4x256xf32>
    %cst_3 = arith.constant dense<0.000000e+00> : vector<2x256xf32>
    %8 = vector.multi_reduction <add>, %7, %cst_3 [1] : vector<2x4x256xf32> to vector<2x256xf32>
    %9 = vector.shape_cast %8 : vector<2x256xf32> to vector<2x1x256xf32>
    %10 = vector.broadcast %9 : vector<2x1x256xf32> to vector<2x4x256xf32>
    %11 = arith.divf %7, %10 : vector<2x4x256xf32>
    %c0_4 = arith.constant 0 : index
    %c0_5 = arith.constant 0 : index
    %c0_6 = arith.constant 0 : index
    %12 = vector.load %arg3[%c0_4, %c0_5, %c0_6] : memref<2x4x256xf32, #tpu.memory_space<vmem>>, vector<2x4x256xf32>
    tpu.vector_store %arg3[%c0_4, %c0_5, %c0_6], %11 {strides = array<i32>} : memref<2x4x256xf32, #tpu.memory_space<vmem>>, vector<2x4x256xf32>,
    return
  }
  func.func @transform_0(%arg0: i32, %arg1: i32) -> (i32, i32, i32) {
    %c0_i32 = arith.constant 0 : i32
    %c0_i32_0 = arith.constant 0 : i32
    return %arg0, %c0_i32, %arg1 : i32, i32, i32
  }
  func.func @transform_1(%arg0: i32, %arg1: i32) -> (i32, i32, i32) {
    %c0_i32 = arith.constant 0 : i32
    %c0_i32_0 = arith.constant 0 : i32
    return %arg0, %c0_i32, %arg1 : i32, i32, i32
  }
}

</mosaic_0001>

<llo_original>
// kernel: tpu_custom_call.1
$region0: #{tpu_custom_call.1}
  #allocation0 [shape = 'u32[]', space=smem, size = 0x4, offset = 0x4, fixed_abs, tag = 'smem constant byte address 0x4 - core index']
  #allocation1 [shape = 'u32[144,128]{1,0:T(1,128)}', space=vmem, size = 0x12000, scoped, tag = 'internal scratch']
  %s0 = inlined_call_operand.hbm [shape: f32[2,4,256], index: 0, kind: input, shape index: {}]
  %s1 = inlined_call_operand.hbm [shape: f32[2,4,256], index: 1, kind: output, shape index: {}]
  %s2 = sld [smem:[#allocation0]]
  $region18: #{tpu_custom_call.1} parent=0
    _
  %s4 = ssub.s32 1, %s2
  %s5 = scalar_select 0, %s4, %s2
  $region1: #{tpu_custom_call.1} parent=0
    #allocation2 [shape = 'u8[8192]{0}', space=vmem, size = 0x2000, scoped, tag = 'input window, operand 0, single buffered']
    #allocation3 [shape = 's32[1]{0}', space=sflag, size = 0x4, scoped, tag = 'scoped memory for tpu_custom_call.1']
    #allocation4 [shape = 's32[1]{0}', space=sflag, size = 0x4, scoped, tag = 'scoped memory for tpu_custom_call.1']
    #allocation5 [shape = 'u8[8192]{0}', space=vmem, size = 0x2000, scoped, tag = 'output window, operand 0, single buffered']
    %6 = vsyncpa [#allocation3], 0
    %7 = vsyncpa [#allocation4], 0
    // Predicated region
    $region2: #{tpu_custom_call.1} parent=1 // pred_check
      _
    $region3: #{tpu_custom_call.1} parent=1 // pred_check_branch
      %9 = sbr.rel (0) target = $region5
    $region4: #{tpu_custom_call.1} parent=1 // pred_region
      %s11 = ssub.s32 256, 256
      %12 = vsyncadd [#allocation3], %s11
      %s13 = sshll.u32 [#allocation2], 4
      %s14 = int_to_ptr.vmem [resolvable:$true] %s13
      %19 = dma.hbm_to_vmem [thread:$0]  %s0, 256, %s14, [#allocation3], 128, 128, 8
    $region5: #{tpu_custom_call.1} parent=1 // pred_fallthru
      _
    // Predicated region
    $region6: #{tpu_custom_call.1} parent=1 // pred_check
      _
    $region7: #{tpu_custom_call.1} parent=1 // pred_check_branch
      %21 = sbr.rel (0) target = $region9
    $region8: #{tpu_custom_call.1} parent=1 // pred_region
      %22 = dma.done [#allocation3], 256
    $region9: #{tpu_custom_call.1} parent=1 // pred_fallthru
      _
    %v23 = vld [vmem:[#allocation2] sm:$0xff]
    %v24 = vld [vmem:[#allocation2 + $0x8] sm:$0xff]
    %v25 = vrcp.pop 1e-06
    %v26 = vmul.f32 %v23, %v25
    %v27 = vmul.f32 %v24, %v25
    %v30 = vcombine.high %v26, %v26
    %v31 = vcombine.high %v27, %v27
    %vm34 = vcmask 1043456
    %v35 = vsel %vm34, %v26, -inf
    %v36 = vrot.slane %v35, 4
    %v37 = vmax.f32 %v35, %v36
    %v38 = vrot.slane %v37, 2
    %v39 = vmax.f32 %v37, %v38
    %v40 = vrot.slane %v39, 1
    %v41 = vmax.f32 %v39, %v40
    %v42 = vsel %vm34, %v30, -inf
    %v43 = vrot.slane %v42, 4
    %v44 = vmax.f32 %v42, %v43
    %v45 = vrot.slane %v44, 2
    %v46 = vmax.f32 %v44, %v45
    %v47 = vrot.slane %v46, 1
    %v48 = vmax.f32 %v46, %v47
    %v49 = vsel %vm34, %v27, -inf
    %v50 = vrot.slane %v49, 4
    %v51 = vmax.f32 %v49, %v50
    %v52 = vrot.slane %v51, 2
    %v53 = vmax.f32 %v51, %v52
    %v54 = vrot.slane %v53, 1
    %v55 = vmax.f32 %v53, %v54
    %v56 = vsel %vm34, %v31, -inf
    %v57 = vrot.slane %v56, 4
    %v58 = vmax.f32 %v56, %v57
    %v59 = vrot.slane %v58, 2
    %v60 = vmax.f32 %v58, %v59
    %v61 = vrot.slane %v60, 1
    %v62 = vmax.f32 %v60, %v61
    %v67 = vcombine.low %v41, %v48
    %v68 = vcombine.low %v55, %v62
    %v71 = vsub.f32 %v26, %v67
    %v72 = vsub.f32 %v27, %v68
    %v73 = vmul.f32 %v71, 1.442695
    %v74 = vpow.pop %v73
    %v75 = vmul.f32 %v72, 1.442695
    %v76 = vpow.pop %v75
    %v79 = vcombine.high %v74, %v74
    %v80 = vcombine.high %v76, %v76
    %v83 = vsel %vm34, %v74, 0.0
    %v84 = vrot.slane %v83, 4
    %v85 = vadd.f32 %v83, %v84
    %v86 = vrot.slane %v85, 2
    %v87 = vadd.f32 %v85, %v86
    %v88 = vrot.slane %v87, 1
    %v89 = vadd.f32 %v87, %v88
    %v90 = vsel %vm34, %v79, 0.0
    %v91 = vrot.slane %v90, 4
    %v92 = vadd.f32 %v90, %v91
    %v93 = vrot.slane %v92, 2
    %v94 = vadd.f32 %v92, %v93
    %v95 = vrot.slane %v94, 1
    %v96 = vadd.f32 %v94, %v95
    %v97 = vsel %vm34, %v76, 0.0
    %v98 = vrot.slane %v97, 4
    %v99 = vadd.f32 %v97, %v98
    %v100 = vrot.slane %v99, 2
    %v101 = vadd.f32 %v99, %v100
    %v102 = vrot.slane %v101, 1
    %v103 = vadd.f32 %v101, %v102
    %v104 = vsel %vm34, %v80, 0.0
    %v105 = vrot.slane %v104, 4
    %v106 = vadd.f32 %v104, %v105
    %v107 = vrot.slane %v106, 2
    %v108 = vadd.f32 %v106, %v107
    %v109 = vrot.slane %v108, 1
    %v110 = vadd.f32 %v108, %v109
    %v115 = vcombine.low %v89, %v96
    %v116 = vcombine.low %v103, %v110
    %v119 = vrcp.pop %v115
    %v120 = vmul.f32 %v74, %v119
    %v121 = vrcp.pop %v116
    %v122 = vmul.f32 %v76, %v121
    %123 = vst [vmem:[#allocation5] sm:$0xff] %v120
    %124 = vst [vmem:[#allocation5 + $0x8] sm:$0xff] %v122
    // Predicated region
    $region10: #{tpu_custom_call.1} parent=1 // pred_check
      _
    $region11: #{tpu_custom_call.1} parent=1 // pred_check_branch
      %126 = sbr.rel (0) target = $region13
    $region12: #{tpu_custom_call.1} parent=1 // pred_region
      %s128 = ssub.s32 256, 256
      %129 = vsyncadd [#allocation4], %s128
      %s130 = sshll.u32 [#allocation5], 4
      %s131 = int_to_ptr.vmem [resolvable:$true] %s130
      %136 = dma.vmem_to_hbm [thread:$0]  %s131, 256, %s1, [#allocation4], 128, 128, 8
    $region13: #{tpu_custom_call.1} parent=1 // pred_fallthru
      _
    // Predicated region
    $region14: #{tpu_custom_call.1} parent=1 // pred_check
      _
    $region15: #{tpu_custom_call.1} parent=1 // pred_check_branch
      %138 = sbr.rel (0) target = $region17
    $region16: #{tpu_custom_call.1} parent=1 // pred_region
      %139 = dma.done [#allocation4], 256
    $region17: #{tpu_custom_call.1} parent=1 // pred_fallthru
      _
    %140 = vsyncpa [#allocation3], 1
    %141 = vsyncpa [#allocation4], 1

</llo_original>
